<compile_context>
chip_gen: v6e
topology: v6e:2x2x1
jax: 0.10.0
libtpu: 0.0.40
codegen_flags: <defaults>
</compile_context>

<pallas_src>
import jax
import jax.numpy as jnp
from jax.experimental import pallas as pl
from jax.experimental.pallas import tpu as pltpu


# ----------------------------------------------------------------------------
# Glue: axis-angle -> direction cosine matrix (exact port of rv2dcm)
# ----------------------------------------------------------------------------
def rv2dcm(rv):
    """rv: [B, 3] -> dcm: [B, 3, 3] (matches the PyTorch reference exactly)."""
    angle = jnp.linalg.norm(rv + 1e-08, ord=2, axis=1)          # [B]
    axis = rv / angle[:, None]                                  # [B, 3]
    s = jnp.sin(angle)[:, None, None]                           # [B, 1, 1]
    c = jnp.cos(angle)[:, None, None]                           # [B, 1, 1]
    I = jnp.broadcast_to(jnp.eye(3, dtype=rv.dtype), (rv.shape[0], 3, 3))
    z = jnp.zeros_like(angle)
    K = jnp.stack(
        (
            jnp.stack((z, -axis[:, 2], axis[:, 1]), axis=1),
            jnp.stack((axis[:, 2], z, -axis[:, 0]), axis=1),
            jnp.stack((-axis[:, 1], axis[:, 0], z), axis=1),
        ),
        axis=1,
    )                                                           # [B, 3, 3]
    return I + s * K + (1.0 - c) * jnp.matmul(K, K)


# ----------------------------------------------------------------------------
# Pallas kernel: one (row-tile, batch) step. Dense (TR, CW) coordinate planes;
# rotation expanded as scalar*plane VPU FMAs (no MXU); direct per-plane stores.
# ----------------------------------------------------------------------------
def ycb_transform_kernel(rt_ref, vn_ref, out_ref):
    # rt_ref : (B*12,) f32 in SMEM  -- per pose: [R row-major (9), t (3)]
    # vn_ref : (6, TR, CW) f32 VMEM -- planes 0..2 = vertex x/y/z, 3..5 = normal x/y/z
    # out_ref: (1, 6, TR, CW) f32   -- planes 0..2 = R@V + t, 3..5 = R@N
    b = pl.program_id(1)
    base = b * 12

    r00 = rt_ref[base + 0]
    r01 = rt_ref[base + 1]
    r02 = rt_ref[base + 2]
    r10 = rt_ref[base + 3]
    r11 = rt_ref[base + 4]
    r12 = rt_ref[base + 5]
    r20 = rt_ref[base + 6]
    r21 = rt_ref[base + 7]
    r22 = rt_ref[base + 8]
    t0 = rt_ref[base + 9]
    t1 = rt_ref[base + 10]
    t2 = rt_ref[base + 11]

    v0 = vn_ref[0]                         # (TR, CW) dense planes
    v1 = vn_ref[1]
    v2 = vn_ref[2]
    n0 = vn_ref[3]
    n1 = vn_ref[4]
    n2 = vn_ref[5]

    out_ref[0, 0] = r00 * v0 + r01 * v1 + r02 * v2 + t0
    out_ref[0, 1] = r10 * v0 + r11 * v1 + r12 * v2 + t1
    out_ref[0, 2] = r20 * v0 + r21 * v1 + r22 * v2 + t2
    out_ref[0, 3] = r00 * n0 + r01 * n1 + r02 * n2
    out_ref[0, 4] = r10 * n0 + r11 * n1 + r12 * n2
    out_ref[0, 5] = r20 * n0 + r21 * n1 + r22 * n2


def _round_up(x, m):
    return ((x + m - 1) // m) * m


def _choose_tiling(N, B, tile_cap):
    """Pick (CW, TR, num_tiles, n_pad) for the [6, R, CW] planar layout."""
    LANE, SUB = 128, 8
    # Cap per-step lanes so 2x(in+out) double-buffered f32 stays <= ~24 MiB
    # (96 bytes / lane), safe for v7x's 64 MiB VMEM with a 32 MiB scoped limit.
    tile_cap = max(LANE, min(int(tile_cap), 262144))

    CW = 512 if N >= 512 else _round_up(N, LANE)      # lane width (mult. of 128)
    rows_needed = pl.cdiv(N, CW)                      # rows of width CW covering N
    max_rows = max(SUB, ((tile_cap // CW) // SUB) * SUB)

    if rows_needed <= max_rows:
        tr = rows_needed                              # full-extent row block
        num_tiles = 1
    else:
        tr = max_rows                                 # multiple of 8
        num_tiles = pl.cdiv(rows_needed, tr)

    # v7x has 2 TensorCores: keep >= 2 steps on a parallel grid axis.
    if B == 1 and num_tiles == 1 and rows_needed >= 2 * SUB:
        tr = _round_up(pl.cdiv(rows_needed, 2), SUB)
        num_tiles = pl.cdiv(rows_needed, tr)

    n_pad = num_tiles * tr * CW
    return CW, tr, num_tiles, n_pad


def ycb_forward(r, t, v_buf, n_buf, *, tile_cap=131072, planar_output=False):
    """Forward pass of YCBLayer.

    Args:
      r:     [B, 3] axis-angle rotations (float32).
      t:     [B, 3] translations (float32).
      v_buf: [3, N] vertex buffer.
      n_buf: [3, N] normal buffer.
      tile_cap: max lanes (elements per plane) per grid step.
      planar_output: if True, return ([B,3,N], [B,3,N]) lane-dense planar
        outputs and skip the final permute (saves a full memory-bound HBM pass
        when the consumer can accept that layout).

    Returns:
      (v_out, n_out): each [B, N, 3] (module semantics), or [B, 3, N] if
      planar_output=True.
    """
    B = r.shape[0]
    N = v_buf.shape[1]
    dtype = jnp.float32

    # --- scalar setup (O(B) glue) -------------------------------------------
    R = rv2dcm(r.astype(dtype))                                   # [B, 3, 3]
    rt = jnp.concatenate(
        [R.reshape(B, 9), t.astype(dtype)], axis=1).reshape(B * 12)  # [B*12] 1-D SMEM table

    # --- dense planar mesh slab: [6, N] -> pad -> [6, R_total, CW] ----------
    CW, TR, num_tiles, n_pad = _choose_tiling(N, B, tile_cap)
    R_total = num_tiles * TR

    vn = jnp.concatenate([v_buf, n_buf], axis=0).astype(dtype)    # [6, N]
    if n_pad != N:
        vn = jnp.pad(vn, ((0, 0), (0, n_pad - N)))
    vn = vn.reshape(6, R_total, CW)                               # contiguous: metadata-only

    # Grid: row-tile axis OUTER, batch INNER; the mesh block index is
    # independent of b, so the slab is DMA'd once per tile and reused across
    # the whole batch (input HBM traffic /B).
    grid = (num_tiles, B)

    out = pl.pallas_call(
        ycb_transform_kernel,
        out_shape=jax.ShapeDtypeStruct((B, 6, R_total, CW), dtype),
        grid_spec=pltpu.PrefetchScalarGridSpec(
            num_scalar_prefetch=0,
            grid=grid,
            in_specs=[
                # R/t table: whole 1-D [B*12] array resident in SMEM.
                pl.BlockSpec(memory_space=pltpu.MemorySpace.SMEM),
                # Mesh slab: dense (6, TR, CW) block, independent of b.
                pl.BlockSpec((6, TR, CW), lambda j, b: (0, j, 0)),
            ],
            out_specs=pl.BlockSpec((1, 6, TR, CW), lambda j, b: (b, 0, j, 0)),
        ),
        compiler_params=pltpu.CompilerParams(
            dimension_semantics=("parallel", "parallel"),
            vmem_limit_bytes=32 * 1024 * 1024,
        ),
    )(rt, vn)

    ovn = out.reshape(B, 6, n_pad)[:, :, :N]      # drop padded columns: [B, 6, N]
    if planar_output:
        return ovn[:, 0:3, :], ovn[:, 3:6, :]

    # Layout glue only (== torch .permute(0, 2, 1)); this is a separate
    # memory-bound XLA pass -- prefer planar_output=True / fuse downstream.
    v_out = jnp.transpose(ovn[:, 0:3, :], (0, 2, 1))
    n_out = jnp.transpose(ovn[:, 3:6, :], (0, 2, 1))
    return v_out, n_out


# ----------------------------------------------------------------------------
# Pure-JAX reference for verification.
# ----------------------------------------------------------------------------
def ycb_forward_ref(r, t, v_buf, n_buf):
    R = rv2dcm(r)
    v = jnp.transpose(jnp.matmul(R, v_buf), (0, 2, 1)) + t[:, None, :]
    n = jnp.transpose(jnp.matmul(R, n_buf), (0, 2, 1))
    return v, n


if __name__ == "__main__":
    # Deterministic synthetic "mesh" (the real module loads an .obj file).
    # TODO(synk): real YCB vertex/normal buffers come from textured_simple.obj;
    # here they are synthesized deterministically.
    key = jax.random.PRNGKey(0)
    k_v, k_n, k_r, k_t = jax.random.split(key, 4)

    B = 2          # batch of poses
    N = 300        # vertex count deliberately NOT a multiple of 128 (padding path)

    v_buf = jax.random.normal(k_v, (3, N), dtype=jnp.float32)          # [3, N]
    n_raw = jax.random.normal(k_n, (3, N), dtype=jnp.float32)
    n_buf = n_raw / jnp.linalg.norm(n_raw, axis=0, keepdims=True)      # [3, N]

    r = 0.5 * jax.random.normal(k_r, (B, 3), dtype=jnp.float32)        # axis-angle
    t = jax.random.normal(k_t, (B, 3), dtype=jnp.float32)              # translation

    v_out, n_out = ycb_forward(r, t, v_buf, n_buf)
    jax.block_until_ready((v_out, n_out))

    v_ref, n_ref = ycb_forward_ref(r, t, v_buf, n_buf)
    assert v_out.shape == (B, N, 3) and n_out.shape == (B, N, 3)
    assert jnp.allclose(v_out, v_ref, atol=1e-5, rtol=1e-5)
    assert jnp.allclose(n_out, n_ref, atol=1e-5, rtol=1e-5)

    # Planar (lane-dense) fast path.
    v_pl, n_pl = ycb_forward(r, t, v_buf, n_buf, planar_output=True)
    jax.block_until_ready((v_pl, n_pl))
    assert jnp.allclose(jnp.transpose(v_pl, (0, 2, 1)), v_ref, atol=1e-5, rtol=1e-5)
    assert jnp.allclose(jnp.transpose(n_pl, (0, 2, 1)), n_ref, atol=1e-5, rtol=1e-5)

    # Multi-tile + row-padding path (small tile_cap forces >1 tile and padding).
    N2 = 4500
    k_v2, k_n2 = jax.random.split(k_v, 2)
    v2 = jax.random.normal(k_v2, (3, N2), dtype=jnp.float32)
    n2 = jax.random.normal(k_n2, (3, N2), dtype=jnp.float32)
    v_out2, n_out2 = ycb_forward(r, t, v2, n2, tile_cap=4096)
    jax.block_until_ready((v_out2, n_out2))
    v_ref2, n_ref2 = ycb_forward_ref(r, t, v2, n2)
    assert jnp.allclose(v_out2, v_ref2, atol=1e-5, rtol=1e-5)
    assert jnp.allclose(n_out2, n_ref2, atol=1e-5, rtol=1e-5)

    print("KERNEL_OK")
</pallas_src>

<mosaic_0001>
module attributes {stable_mosaic.version = 11 : i64} {
  func.func @ycb_transform_kernel(%arg0: i32, %arg1: i32, %arg2: memref<24xf32, #tpu.memory_space<smem>>, %arg3: memref<6x1x384xf32, #tpu.memory_space<vmem>>, %arg4: memref<1x6x1x384xf32, #tpu.memory_space<vmem>>) attributes {dimension_semantics = [#tpu.dimension_semantics<parallel>, #tpu.dimension_semantics<parallel>], iteration_bounds = array<i64: 1, 2>, scalar_prefetch = 0 : i64, scratch_operands = 0 : i64, tpu.core_type = #tpu.core_type<tc>, window_params = [{transform_indices = @transform_0, window_bounds = array<i64: 24>}, {transform_indices = @transform_1, window_bounds = array<i64: 6, 1, 384>}, {transform_indices = @transform_2, window_bounds = array<i64: 1, 6, 1, 384>}]} {
    %c12_i32 = arith.constant 12 : i32
    %0 = arith.muli %arg1, %c12_i32 : i32
    %c0_i32 = arith.constant 0 : i32
    %1 = arith.addi %0, %c0_i32 : i32
    %2 = arith.index_cast %1 : i32 to index
    %3 = memref.load %arg2[%2] : memref<24xf32, #tpu.memory_space<smem>>
    %c1_i32 = arith.constant 1 : i32
    %4 = arith.addi %0, %c1_i32 : i32
    %5 = arith.index_cast %4 : i32 to index
    %6 = memref.load %arg2[%5] : memref<24xf32, #tpu.memory_space<smem>>
    %c2_i32 = arith.constant 2 : i32
    %7 = arith.addi %0, %c2_i32 : i32
    %8 = arith.index_cast %7 : i32 to index
    %9 = memref.load %arg2[%8] : memref<24xf32, #tpu.memory_space<smem>>
    %c3_i32 = arith.constant 3 : i32
    %10 = arith.addi %0, %c3_i32 : i32
    %11 = arith.index_cast %10 : i32 to index
    %12 = memref.load %arg2[%11] : memref<24xf32, #tpu.memory_space<smem>>
    %c4_i32 = arith.constant 4 : i32
    %13 = arith.addi %0, %c4_i32 : i32
    %14 = arith.index_cast %13 : i32 to index
    %15 = memref.load %arg2[%14] : memref<24xf32, #tpu.memory_space<smem>>
    %c5_i32 = arith.constant 5 : i32
    %16 = arith.addi %0, %c5_i32 : i32
    %17 = arith.index_cast %16 : i32 to index
    %18 = memref.load %arg2[%17] : memref<24xf32, #tpu.memory_space<smem>>
    %c6_i32 = arith.constant 6 : i32
    %19 = arith.addi %0, %c6_i32 : i32
    %20 = arith.index_cast %19 : i32 to index
    %21 = memref.load %arg2[%20] : memref<24xf32, #tpu.memory_space<smem>>
    %c7_i32 = arith.constant 7 : i32
    %22 = arith.addi %0, %c7_i32 : i32
    %23 = arith.index_cast %22 : i32 to index
    %24 = memref.load %arg2[%23] : memref<24xf32, #tpu.memory_space<smem>>
    %c8_i32 = arith.constant 8 : i32
    %25 = arith.addi %0, %c8_i32 : i32
    %26 = arith.index_cast %25 : i32 to index
    %27 = memref.load %arg2[%26] : memref<24xf32, #tpu.memory_space<smem>>
    %c9_i32 = arith.constant 9 : i32
    %28 = arith.addi %0, %c9_i32 : i32
    %29 = arith.index_cast %28 : i32 to index
    %30 = memref.load %arg2[%29] : memref<24xf32, #tpu.memory_space<smem>>
    %c10_i32 = arith.constant 10 : i32
    %31 = arith.addi %0, %c10_i32 : i32
    %32 = arith.index_cast %31 : i32 to index
    %33 = memref.load %arg2[%32] : memref<24xf32, #tpu.memory_space<smem>>
    %c11_i32 = arith.constant 11 : i32
    %34 = arith.addi %0, %c11_i32 : i32
    %35 = arith.index_cast %34 : i32 to index
    %36 = memref.load %arg2[%35] : memref<24xf32, #tpu.memory_space<smem>>
    %c0 = arith.constant 0 : index
    %c0_0 = arith.constant 0 : index
    %c0_1 = arith.constant 0 : index
    %37 = vector.load %arg3[%c0, %c0_0, %c0_1] : memref<6x1x384xf32, #tpu.memory_space<vmem>>, vector<1x1x384xf32>
    %38 = vector.shape_cast %37 : vector<1x1x384xf32> to vector<1x384xf32>
    %c1 = arith.constant 1 : index
    %c0_2 = arith.constant 0 : index
    %c0_3 = arith.constant 0 : index
    %39 = vector.load %arg3[%c1, %c0_2, %c0_3] : memref<6x1x384xf32, #tpu.memory_space<vmem>>, vector<1x1x384xf32>
    %40 = vector.shape_cast %39 : vector<1x1x384xf32> to vector<1x384xf32>
    %c2 = arith.constant 2 : index
    %c0_4 = arith.constant 0 : index
    %c0_5 = arith.constant 0 : index
    %41 = vector.load %arg3[%c2, %c0_4, %c0_5] : memref<6x1x384xf32, #tpu.memory_space<vmem>>, vector<1x1x384xf32>
    %42 = vector.shape_cast %41 : vector<1x1x384xf32> to vector<1x384xf32>
    %c3 = arith.constant 3 : index
    %c0_6 = arith.constant 0 : index
    %c0_7 = arith.constant 0 : index
    %43 = vector.load %arg3[%c3, %c0_6, %c0_7] : memref<6x1x384xf32, #tpu.memory_space<vmem>>, vector<1x1x384xf32>
    %44 = vector.shape_cast %43 : vector<1x1x384xf32> to vector<1x384xf32>
    %c4 = arith.constant 4 : index
    %c0_8 = arith.constant 0 : index
    %c0_9 = arith.constant 0 : index
    %45 = vector.load %arg3[%c4, %c0_8, %c0_9] : memref<6x1x384xf32, #tpu.memory_space<vmem>>, vector<1x1x384xf32>
    %46 = vector.shape_cast %45 : vector<1x1x384xf32> to vector<1x384xf32>
    %c5 = arith.constant 5 : index
    %c0_10 = arith.constant 0 : index
    %c0_11 = arith.constant 0 : index
    %47 = vector.load %arg3[%c5, %c0_10, %c0_11] : memref<6x1x384xf32, #tpu.memory_space<vmem>>, vector<1x1x384xf32>
    %48 = vector.shape_cast %47 : vector<1x1x384xf32> to vector<1x384xf32>
    %49 = vector.broadcast %3 : f32 to vector<1x384xf32>
    %50 = arith.mulf %49, %38 : vector<1x384xf32>
    %51 = vector.broadcast %6 : f32 to vector<1x384xf32>
    %52 = arith.mulf %51, %40 : vector<1x384xf32>
    %53 = arith.addf %50, %52 : vector<1x384xf32>
    %54 = vector.broadcast %9 : f32 to vector<1x384xf32>
    %55 = arith.mulf %54, %42 : vector<1x384xf32>
    %56 = arith.addf %53, %55 : vector<1x384xf32>
    %57 = vector.broadcast %30 : f32 to vector<1x384xf32>
    %58 = arith.addf %56, %57 : vector<1x384xf32>
    %c0_12 = arith.constant 0 : index
    %c0_13 = arith.constant 0 : index
    %c0_14 = arith.constant 0 : index
    %c0_15 = arith.constant 0 : index
    %59 = vector.load %arg4[%c0_12, %c0_13, %c0_14, %c0_15] : memref<1x6x1x384xf32, #tpu.memory_space<vmem>>, vector<1x1x1x384xf32>
    %60 = vector.shape_cast %59 : vector<1x1x1x384xf32> to vector<1x384xf32>
    %61 = vector.shape_cast %58 : vector<1x384xf32> to vector<1x1x1x384xf32>
    tpu.vector_store %arg4[%c0_12, %c0_13, %c0_14, %c0_15], %61 {strides = array<i32>} : memref<1x6x1x384xf32, #tpu.memory_space<vmem>>, vector<1x1x1x384xf32>,
    %62 = vector.broadcast %12 : f32 to vector<1x384xf32>
    %63 = arith.mulf %62, %38 : vector<1x384xf32>
    %64 = vector.broadcast %15 : f32 to vector<1x384xf32>
    %65 = arith.mulf %64, %40 : vector<1x384xf32>
    %66 = arith.addf %63, %65 : vector<1x384xf32>
    %67 = vector.broadcast %18 : f32 to vector<1x384xf32>
    %68 = arith.mulf %67, %42 : vector<1x384xf32>
    %69 = arith.addf %66, %68 : vector<1x384xf32>
    %70 = vector.broadcast %33 : f32 to vector<1x384xf32>
    %71 = arith.addf %69, %70 : vector<1x384xf32>
    %c0_16 = arith.constant 0 : index
    %c1_17 = arith.constant 1 : index
    %c0_18 = arith.constant 0 : index
    %c0_19 = arith.constant 0 : index
    %72 = vector.load %arg4[%c0_16, %c1_17, %c0_18, %c0_19] : memref<1x6x1x384xf32, #tpu.memory_space<vmem>>, vector<1x1x1x384xf32>
    %73 = vector.shape_cast %72 : vector<1x1x1x384xf32> to vector<1x384xf32>
    %74 = vector.shape_cast %71 : vector<1x384xf32> to vector<1x1x1x384xf32>
    tpu.vector_store %arg4[%c0_16, %c1_17, %c0_18, %c0_19], %74 {strides = array<i32>} : memref<1x6x1x384xf32, #tpu.memory_space<vmem>>, vector<1x1x1x384xf32>,
    %75 = vector.broadcast %21 : f32 to vector<1x384xf32>
    %76 = arith.mulf %75, %38 : vector<1x384xf32>
    %77 = vector.broadcast %24 : f32 to vector<1x384xf32>
    %78 = arith.mulf %77, %40 : vector<1x384xf32>
    %79 = arith.addf %76, %78 : vector<1x384xf32>
    %80 = vector.broadcast %27 : f32 to vector<1x384xf32>
    %81 = arith.mulf %80, %42 : vector<1x384xf32>
    %82 = arith.addf %79, %81 : vector<1x384xf32>
    %83 = vector.broadcast %36 : f32 to vector<1x384xf32>
    %84 = arith.addf %82, %83 : vector<1x384xf32>
    %c0_20 = arith.constant 0 : index
    %c2_21 = arith.constant 2 : index
    %c0_22 = arith.constant 0 : index
    %c0_23 = arith.constant 0 : index
    %85 = vector.load %arg4[%c0_20, %c2_21, %c0_22, %c0_23] : memref<1x6x1x384xf32, #tpu.memory_space<vmem>>, vector<1x1x1x384xf32>
    %86 = vector.shape_cast %85 : vector<1x1x1x384xf32> to vector<1x384xf32>
    %87 = vector.shape_cast %84 : vector<1x384xf32> to vector<1x1x1x384xf32>
    tpu.vector_store %arg4[%c0_20, %c2_21, %c0_22, %c0_23], %87 {strides = array<i32>} : memref<1x6x1x384xf32, #tpu.memory_space<vmem>>, vector<1x1x1x384xf32>,
    %88 = vector.broadcast %3 : f32 to vector<1x384xf32>
    %89 = arith.mulf %88, %44 : vector<1x384xf32>
    %90 = vector.broadcast %6 : f32 to vector<1x384xf32>
    %91 = arith.mulf %90, %46 : vector<1x384xf32>
    %92 = arith.addf %89, %91 : vector<1x384xf32>
    %93 = vector.broadcast %9 : f32 to vector<1x384xf32>
    %94 = arith.mulf %93, %48 : vector<1x384xf32>
    %95 = arith.addf %92, %94 : vector<1x384xf32>
    %c0_24 = arith.constant 0 : index
    %c3_25 = arith.constant 3 : index
    %c0_26 = arith.constant 0 : index
    %c0_27 = arith.constant 0 : index
    %96 = vector.load %arg4[%c0_24, %c3_25, %c0_26, %c0_27] : memref<1x6x1x384xf32, #tpu.memory_space<vmem>>, vector<1x1x1x384xf32>
    %97 = vector.shape_cast %96 : vector<1x1x1x384xf32> to vector<1x384xf32>
    %98 = vector.shape_cast %95 : vector<1x384xf32> to vector<1x1x1x384xf32>
    tpu.vector_store %arg4[%c0_24, %c3_25, %c0_26, %c0_27], %98 {strides = array<i32>} : memref<1x6x1x384xf32, #tpu.memory_space<vmem>>, vector<1x1x1x384xf32>,
    %99 = vector.broadcast %12 : f32 to vector<1x384xf32>
    %100 = arith.mulf %99, %44 : vector<1x384xf32>
    %101 = vector.broadcast %15 : f32 to vector<1x384xf32>
    %102 = arith.mulf %101, %46 : vector<1x384xf32>
    %103 = arith.addf %100, %102 : vector<1x384xf32>
    %104 = vector.broadcast %18 : f32 to vector<1x384xf32>
    %105 = arith.mulf %104, %48 : vector<1x384xf32>
    %106 = arith.addf %103, %105 : vector<1x384xf32>
    %c0_28 = arith.constant 0 : index
    %c4_29 = arith.constant 4 : index
    %c0_30 = arith.constant 0 : index
    %c0_31 = arith.constant 0 : index
    %107 = vector.load %arg4[%c0_28, %c4_29, %c0_30, %c0_31] : memref<1x6x1x384xf32, #tpu.memory_space<vmem>>, vector<1x1x1x384xf32>
    %108 = vector.shape_cast %107 : vector<1x1x1x384xf32> to vector<1x384xf32>
    %109 = vector.shape_cast %106 : vector<1x384xf32> to vector<1x1x1x384xf32>
    tpu.vector_store %arg4[%c0_28, %c4_29, %c0_30, %c0_31], %109 {strides = array<i32>} : memref<1x6x1x384xf32, #tpu.memory_space<vmem>>, vector<1x1x1x384xf32>,
    %110 = vector.broadcast %21 : f32 to vector<1x384xf32>
    %111 = arith.mulf %110, %44 : vector<1x384xf32>
    %112 = vector.broadcast %24 : f32 to vector<1x384xf32>
    %113 = arith.mulf %112, %46 : vector<1x384xf32>
    %114 = arith.addf %111, %113 : vector<1x384xf32>
    %115 = vector.broadcast %27 : f32 to vector<1x384xf32>
    %116 = arith.mulf %115, %48 : vector<1x384xf32>
    %117 = arith.addf %114, %116 : vector<1x384xf32>
    %c0_32 = arith.constant 0 : index
    %c5_33 = arith.constant 5 : index
    %c0_34 = arith.constant 0 : index
    %c0_35 = arith.constant 0 : index
    %118 = vector.load %arg4[%c0_32, %c5_33, %c0_34, %c0_35] : memref<1x6x1x384xf32, #tpu.memory_space<vmem>>, vector<1x1x1x384xf32>
    %119 = vector.shape_cast %118 : vector<1x1x1x384xf32> to vector<1x384xf32>
    %120 = vector.shape_cast %117 : vector<1x384xf32> to vector<1x1x1x384xf32>
    tpu.vector_store %arg4[%c0_32, %c5_33, %c0_34, %c0_35], %120 {strides = array<i32>} : memref<1x6x1x384xf32, #tpu.memory_space<vmem>>, vector<1x1x1x384xf32>,
    return
  }
  func.func @transform_0(%arg0: i32, %arg1: i32) -> i32 {
    %c0_i32 = arith.constant 0 : i32
    %c0_i32_0 = arith.constant 0 : i32
    return %c0_i32 : i32
  }
  func.func @transform_1(%arg0: i32, %arg1: i32) -> (i32, i32, i32) {
    %c0_i32 = arith.constant 0 : i32
    %c0_i32_0 = arith.constant 0 : i32
    %c0_i32_1 = arith.constant 0 : i32
    return %c0_i32, %arg0, %c0_i32_0 : i32, i32, i32
  }
  func.func @transform_2(%arg0: i32, %arg1: i32) -> (i32, i32, i32, i32) {
    %c0_i32 = arith.constant 0 : i32
    %c0_i32_0 = arith.constant 0 : i32
    %c0_i32_1 = arith.constant 0 : i32
    return %arg1, %c0_i32, %arg0, %c0_i32_0 : i32, i32, i32, i32
  }
}

</mosaic_0001>

<llo_original>
// kernel: tpu_custom_call.1
$region0: #{tpu_custom_call.1}
  #allocation0 [shape = 'u32[]', space=smem, size = 0x4, offset = 0x4, fixed_abs, tag = 'smem constant byte address 0x4 - core index']
  #allocation1 [shape = 'u32[144,128]{1,0:T(1,128)}', space=vmem, size = 0x12000, scoped, tag = 'internal scratch']
  %s0 = inlined_call_operand.hbm [shape: f32[24], index: 0, kind: input, shape index: {}]
  %s1 = inlined_call_operand.hbm [shape: f32[6,1,384], index: 1, kind: input, shape index: {}]
  %s2 = inlined_call_operand.hbm [shape: f32[2,6,1,384], index: 2, kind: output, shape index: {}]
  %s3 = sld [smem:[#allocation0]]
  $region49: #{tpu_custom_call.1} parent=0
    _
  %s5 = ssub.s32 1, %s3
  %s6 = scalar_select 0, %s5, %s3
  $region1: #{tpu_custom_call.1} parent=0
    #allocation2 [shape = 'u8[512]{0}', space=smem, size = 0x200, scoped, tag = 'input window, operand 0, single buffered']
    #allocation3 [shape = 's32[2]{0}', space=sflag, size = 0x8, scoped, tag = 'scoped memory for tpu_custom_call.1']
    #allocation4 [shape = 's32[2]{0}', space=sflag, size = 0x8, scoped, tag = 'scoped memory for tpu_custom_call.1']
    #allocation5 [shape = 's32[2]{0}', space=sflag, size = 0x8, scoped, tag = 'scoped memory for tpu_custom_call.1']
    #allocation6 [shape = 'u8[9216]{0}', space=vmem, size = 0x2400, scoped, tag = 'input window, operand 1, single buffered']
    #allocation7 [shape = 'u8[18432]{0}', space=vmem, size = 0x4800, scoped, tag = 'output window, operand 0']
    %7 = vsyncpa [#allocation5], 0
    %8 = vsyncpa [#allocation3], 0
    %9 = vsyncpa [#allocation4], 0
    %s10 = scalar_lea.sflag [#allocation4], 1
    %11 = vsyncpa %s10, 0
    loop: start=0, step=1, limit=4
    $region2: #{tpu_custom_call.1} parent=1 // loop_pre_header
      _
    $region3: #{tpu_custom_call.1} parent=1 // loop_header
      %s13 = sphi 0, %s17
      %p14 = scmp.ge.s32.totalorder %s13, 4
      %s20 = sphi 0, %s32
      %s21 = sphi 0, %s28
      %s22 = sphi 0, %s20
      %s23 = sphi 0, %s21
      %s24 = sphi 0, %s22
      %s25 = sphi 0, %s23
      %s33 = sphi 0, %s33
      %s35 = sphi 0, %s33
      %s36 = sphi 0, %s35
      %s50 = sphi 0, %s36
      %s56 = sphi 0, %s58
      %s59 = sphi 0, %s56
      %s60 = sphi 0, %s59
      %s76 = sphi 0, %s60
      %s84 = sphi 0, %s86
      %s87 = sphi 0, %s84
      %s88 = sphi 0, %s87
      %s104 = sphi 0, %s88
    $region4: #{tpu_custom_call.1} parent=1 // loop_header_branch
      %16 = sbr.rel (%p14) target = $region8
    $region5: #{tpu_custom_call.1} parent=1 // loop_body
      %s18 = ssub.s32 %s13, 1
      %s19 = ssub.s32 %s13, 2
      %s26 = sadd.s32 1, %s21
      %p27 = scmp.ge.s32.totalorder %s26, 2
      %s28 = scalar_select %p27, 0, %s26
      %s29 = sadd.s32 1, %s20
      %s30 = scalar_select %p27, %s29, %s20
      %p31 = scmp.ge.s32.totalorder %s30, 1
      %s32 = scalar_select %p31, 0, %s30
      %s34 = sadd.s32 %s33, 1
      %p37 = scmp.eq.s32.totalorder %s13, 1
      %p38 = scmp.ne.s32.totalorder %s33, %s35
      %p39 = scmp.eq.s32.totalorder %s13, 0
      %p40 = por %p38, %p39
      %p41 = scmp.ne.s32.totalorder %s33, %s35
      %p42 = scmp.eq.s32.totalorder %s18, 1
      %p43 = por %p41, %p42
      %p44 = scmp.ne.s32.totalorder %s35, %s36
      %p45 = scmp.eq.s32.totalorder %s18, 0
      %p46 = por %p44, %p45
      %p47 = scmp.ne.s32.totalorder %s35, %s36
      %p48 = scmp.eq.s32.totalorder %s19, 1
      %p49 = por %p47, %p48
      %p51 = scmp.ne.s32.totalorder %s36, %s50
      %p52 = scmp.eq.s32.totalorder %s19, 0
      %p53 = por %p51, %p52
      %s54 = ssub.s32 %s20, %s32
      %p55 = scmp.eq.s32.totalorder %s54, 0
      %s57 = sadd.s32 %s56, 1
      %s58 = scalar_select %p55, %s56, %s57
      %p61 = pneg %p55
      %p62 = scmp.eq.s32.totalorder %s13, 1
      %p63 = por %p61, %p62
      %p64 = scmp.ne.s32.totalorder %s56, %s59
      %p65 = scmp.eq.s32.totalorder %s13, 0
      %p66 = por %p64, %p65
      %p67 = scmp.ne.s32.totalorder %s56, %s59
      %p68 = scmp.eq.s32.totalorder %s18, 1
      %p69 = por %p67, %p68
      %p70 = scmp.ne.s32.totalorder %s59, %s60
      %p71 = scmp.eq.s32.totalorder %s18, 0
      %p72 = por %p70, %p71
      %p73 = scmp.ne.s32.totalorder %s59, %s60
      %p74 = scmp.eq.s32.totalorder %s19, 1
      %p75 = por %p73, %p74
      %p77 = scmp.ne.s32.totalorder %s60, %s76
      %p78 = scmp.eq.s32.totalorder %s19, 0
      %p79 = por %p77, %p78
      %s80 = ssub.s32 %s21, %s28
      %s81 = ssub.s32 %s20, %s32
      %s82 = sor.u32 %s80, %s81
      %p83 = scmp.eq.s32.totalorder %s82, 0
      %s85 = sadd.s32 %s84, 1
      %s86 = scalar_select %p83, %s84, %s85
      %p89 = pneg %p83
      %p90 = scmp.eq.s32.totalorder %s13, 1
      %p91 = por %p89, %p90
      %p92 = scmp.ne.s32.totalorder %s84, %s87
      %p93 = scmp.eq.s32.totalorder %s13, 0
      %p94 = por %p92, %p93
      %p95 = scmp.ne.s32.totalorder %s84, %s87
      %p96 = scmp.eq.s32.totalorder %s18, 1
      %p97 = por %p95, %p96
      %p98 = scmp.ne.s32.totalorder %s87, %s88
      %p99 = scmp.eq.s32.totalorder %s18, 0
      %p100 = por %p98, %p99
      %p101 = scmp.ne.s32.totalorder %s87, %s88
      %p102 = scmp.eq.s32.totalorder %s19, 1
      %p103 = por %p101, %p102
      %p105 = scmp.ne.s32.totalorder %s88, %s104
      %p106 = scmp.eq.s32.totalorder %s19, 0
      %p107 = por %p105, %p106
      %p108 = scmp.le.s32.totalorder 1, %s13
      %p109 = scmp.lt.s32.totalorder %s13, 3
      %p110 = pnand %p108, %p109
      %p111 = pneg %p110
      // Predicated region
      $region9: #{tpu_custom_call.1} parent=5 // pred_check
        _
      $region10: #{tpu_custom_call.1} parent=5 // pred_check_branch
        %113 = sbr.rel (%p110) target = $region12
      $region11: #{tpu_custom_call.1} parent=5 // pred_region
        %s114 = ssub.s32 %s13, 1
        // Predicated region
        $region13: #{tpu_custom_call.1} parent=11 // pred_check
          %p115 = pneg %p46
        $region14: #{tpu_custom_call.1} parent=11 // pred_check_branch
          %117 = sbr.rel (%p115) target = $region16
        $region15: #{tpu_custom_call.1} parent=11 // pred_region
          %s119 = ssub.s32 16, 16
          %120 = vsyncadd [#allocation5], %s119
          %123 = dma.hbm_to_smem %s0, 16, [#allocation2], [#allocation5]
        $region16: #{tpu_custom_call.1} parent=11 // pred_fallthru
          _
        // Predicated region
        $region17: #{tpu_custom_call.1} parent=11 // pred_check
          %p124 = pneg %p72
        $region18: #{tpu_custom_call.1} parent=11 // pred_check_branch
          %126 = sbr.rel (%p124) target = $region20
        $region19: #{tpu_custom_call.1} parent=11 // pred_region
          %s128 = ssub.s32 288, 288
          %129 = vsyncadd [#allocation3], %s128
          %s130 = smul.addr %s22, 3
          %s131 = smul.addr %s130, 16
          %s132 = scalar_lea.hbm %s1, %s131
          %s133 = sshll.u32 [#allocation6], 4
          %s134 = int_to_ptr.vmem [resolvable:$true] %s133
          %139 = dma.hbm_to_vmem [thread:$0]  %s132, 288, %s134, [#allocation3], 48, 48, 3
        $region20: #{tpu_custom_call.1} parent=11 // pred_fallthru
          _
      $region12: #{tpu_custom_call.1} parent=5 // pred_fallthru
        _
      %p140 = scmp.lt.s32.totalorder %s13, 2
      // Predicated region
      $region21: #{tpu_custom_call.1} parent=5 // pred_check
        %p141 = pneg %p140
      $region22: #{tpu_custom_call.1} parent=5 // pred_check_branch
        %143 = sbr.rel (%p141) target = $region24
      $region23: #{tpu_custom_call.1} parent=5 // pred_region
        _
      $region24: #{tpu_custom_call.1} parent=5 // pred_fallthru
        _
      %p144 = scmp.le.s32.totalorder 1, %s13
      %p145 = scmp.lt.s32.totalorder %s13, 3
      %p146 = pnand %p144, %p145
      %p147 = pneg %p146
      // Predicated region
      $region25: #{tpu_custom_call.1} parent=5 // pred_check
        _
      $region26: #{tpu_custom_call.1} parent=5 // pred_check_branch
        %149 = sbr.rel (%p146) target = $region28
      $region27: #{tpu_custom_call.1} parent=5 // pred_region
        %s150 = ssub.s32 %s13, 1
        // Predicated region
        $region29: #{tpu_custom_call.1} parent=27 // pred_check
          %p151 = pneg %p46
        $region30: #{tpu_custom_call.1} parent=27 // pred_check_branch
          %153 = sbr.rel (%p151) target = $region32
        $region31: #{tpu_custom_call.1} parent=27 // pred_region
          %154 = dma.done [#allocation5], 16
        $region32: #{tpu_custom_call.1} parent=27 // pred_fallthru
          _
        // Predicated region
        $region33: #{tpu_custom_call.1} parent=27 // pred_check
          %p155 = pneg %p72
        $region34: #{tpu_custom_call.1} parent=27 // pred_check_branch
          %157 = sbr.rel (%p155) target = $region36
        $region35: #{tpu_custom_call.1} parent=27 // pred_region
          %158 = dma.done [#allocation3], 288
        $region36: #{tpu_custom_call.1} parent=27 // pred_fallthru
          _
        %159 = sfence
        %p160 = pneg %p46
        %p161 = pneg %p43
        %p162 = pneg %p72
        %p163 = pneg %p69
        %p164 = pneg %p100
        %p165 = pneg %p97
        %s166 = sand.u32 %s87, 1
        %s167 = scalar_lea.sflag [#allocation4], %s166
        %s168 = sand.u32 %s87, 1
        %s169 = smul.addr %s168, 18
        %s170 = scalar_lea.vmem [#allocation7], %s169
        %s171 = smul.u32 %s23, 12
        %s172 = sld [smem:[#allocation2 + %s171]]
        %s173 = sadd.s32 %s171, 1
        %s174 = sld [smem:[#allocation2 + %s173]]
        %s175 = sadd.s32 %s171, 2
        %s176 = sld [smem:[#allocation2 + %s175]]
        %s177 = sadd.s32 %s171, 3
        %s178 = sld [smem:[#allocation2 + %s177]]
        %s179 = sadd.s32 %s171, 4
        %s180 = sld [smem:[#allocation2 + %s179]]
        %s181 = sadd.s32 %s171, 5
        %s182 = sld [smem:[#allocation2 + %s181]]
        %s183 = sadd.s32 %s171, 6
        %s184 = sld [smem:[#allocation2 + %s183]]
        %s185 = sadd.s32 %s171, 7
        %s186 = sld [smem:[#allocation2 + %s185]]
        %s187 = sadd.s32 %s171, 8
        %s188 = sld [smem:[#allocation2 + %s187]]
        %s189 = sadd.s32 %s171, 9
        %s190 = sld [smem:[#allocation2 + %s189]]
        %s191 = sadd.s32 %s171, 10
        %s192 = sld [smem:[#allocation2 + %s191]]
        %s193 = sadd.s32 %s171, 11
        %s194 = sld [smem:[#allocation2 + %s193]]
        %v195 = vld [vmem:[#allocation6] sm:$0x7]
        %s196 = scalar_lea.vmem [#allocation6], 3
        %v197 = vld [vmem:[%s196] sm:$0x7]
        %s198 = scalar_lea.vmem [#allocation6], 6
        %v199 = vld [vmem:[%s198] sm:$0x7]
        %s200 = scalar_lea.vmem [#allocation6], 9
        %v201 = vld [vmem:[%s200] sm:$0x7]
        %s202 = scalar_lea.vmem [#allocation6], 12
        %v203 = vld [vmem:[%s202] sm:$0x7]
        %s204 = scalar_lea.vmem [#allocation6], 15
        %v205 = vld [vmem:[%s204] sm:$0x7]
        %v206 = vstv %s172
        %v207 = vmul.f32 %v206, %v195
        %v208 = vstv %s174
        %v209 = vmul.f32 %v208, %v197
        %v210 = vadd.f32 %v207, %v209
        %v211 = vstv %s176
        %v212 = vmul.f32 %v211, %v199
        %v213 = vadd.f32 %v210, %v212
        %v214 = vstv %s190
        %v215 = vadd.f32 %v213, %v214
        %v216 = vlaneseq
        %vm217 = vcmp.ge.s32.totalorder %v216, 0
        %vm218 = vcmp.lt.s32.totalorder %v216, 384
        %vm219 = vmand %vm217, %vm218
        %220 = vst.msk [vmem:[%s170] sm:$0x7] %vm219, %v215
        %v221 = vstv %s178
        %v222 = vmul.f32 %v221, %v195
        %v223 = vstv %s180
        %v224 = vmul.f32 %v223, %v197
        %v225 = vadd.f32 %v222, %v224
        %v226 = vstv %s182
        %v227 = vmul.f32 %v226, %v199
        %v228 = vadd.f32 %v225, %v227
        %v229 = vstv %s192
        %v230 = vadd.f32 %v228, %v229
        %s231 = scalar_lea.vmem %s170, 3 [#allocation7]
        %232 = vst.msk [vmem:[%s231] sm:$0x7] %vm219, %v230
        %v233 = vstv %s184
        %v234 = vmul.f32 %v233, %v195
        %v235 = vstv %s186
        %v236 = vmul.f32 %v235, %v197
        %v237 = vadd.f32 %v234, %v236
        %v238 = vstv %s188
        %v239 = vmul.f32 %v238, %v199
        %v240 = vadd.f32 %v237, %v239
        %v241 = vstv %s194
        %v242 = vadd.f32 %v240, %v241
        %s243 = scalar_lea.vmem %s170, 6 [#allocation7]
        %244 = vst.msk [vmem:[%s243] sm:$0x7] %vm219, %v242
        %v245 = vmul.f32 %v206, %v201
        %v246 = vmul.f32 %v208, %v203
        %v247 = vadd.f32 %v245, %v246
        %v248 = vmul.f32 %v211, %v205
        %v249 = vadd.f32 %v247, %v248
        %s250 = scalar_lea.vmem %s170, 9 [#allocation7]
        %251 = vst.msk [vmem:[%s250] sm:$0x7] %vm219, %v249
        %v252 = vmul.f32 %v221, %v201
        %v253 = vmul.f32 %v223, %v203
        %v254 = vadd.f32 %v252, %v253
        %v255 = vmul.f32 %v226, %v205
        %v256 = vadd.f32 %v254, %v255
        %s257 = scalar_lea.vmem %s170, 12 [#allocation7]
        %258 = vst.msk [vmem:[%s257] sm:$0x7] %vm219, %v256
        %v259 = vmul.f32 %v233, %v201
        %v260 = vmul.f32 %v235, %v203
        %v261 = vadd.f32 %v259, %v260
        %v262 = vmul.f32 %v238, %v205
        %v263 = vadd.f32 %v261, %v262
        %s264 = scalar_lea.vmem %s170, 15 [#allocation7]
        %265 = vst.msk [vmem:[%s264] sm:$0x7] %vm219, %v263
        %s266 = sand.u32 %s87, 1
        %s267 = scalar_lea.sflag [#allocation4], %s266
        %s268 = sand.u32 %s87, 1
        %s269 = smul.addr %s268, 18
        %s270 = scalar_lea.vmem [#allocation7], %s269
        // Predicated region
        $region37: #{tpu_custom_call.1} parent=27 // pred_check
          %p271 = pneg %p97
        $region38: #{tpu_custom_call.1} parent=27 // pred_check_branch
          %273 = sbr.rel (%p271) target = $region40
        $region39: #{tpu_custom_call.1} parent=27 // pred_region
          %s275 = ssub.s32 288, 288
          %276 = vsyncadd %s267, %s275
          %s277 = smul.addr %s22, 3
          %s278 = smul.addr %s23, 18
          %s279 = sadd.s32 %s277, %s278
          %s280 = smul.addr %s279, 16
          %s281 = scalar_lea.hbm %s2, %s280
          %s282 = sshll.u32 %s270, 4
          %s283 = int_to_ptr.vmem [resolvable:$true] %s282
          %288 = dma.vmem_to_hbm [thread:$0]  %s283, 288, %s281, %s267, 48, 48, 3
        $region40: #{tpu_custom_call.1} parent=27 // pred_fallthru
          _
      $region28: #{tpu_custom_call.1} parent=5 // pred_fallthru
        _
      %p289 = scmp.le.s32.totalorder 2, %s13
      // Predicated region
      $region41: #{tpu_custom_call.1} parent=5 // pred_check
        %p290 = pneg %p289
      $region42: #{tpu_custom_call.1} parent=5 // pred_check_branch
        %292 = sbr.rel (%p290) target = $region44
      $region43: #{tpu_custom_call.1} parent=5 // pred_region
        %s293 = ssub.s32 %s13, 2
        // Predicated region
        $region45: #{tpu_custom_call.1} parent=43 // pred_check
          %p294 = pneg %p103
        $region46: #{tpu_custom_call.1} parent=43 // pred_check_branch
          %296 = sbr.rel (%p294) target = $region48
        $region47: #{tpu_custom_call.1} parent=43 // pred_region
          %s297 = sand.u32 %s88, 1
          %s298 = scalar_lea.sflag [#allocation4], %s297
          %s299 = sand.u32 %s88, 1
          %s300 = smul.addr %s299, 18
          %s301 = scalar_lea.vmem [#allocation7], %s300
          %302 = dma.done %s298, 288
        $region48: #{tpu_custom_call.1} parent=43 // pred_fallthru
          _
      $region44: #{tpu_custom_call.1} parent=5 // pred_fallthru
        _
    $region6: #{tpu_custom_call.1} parent=1 // loop_footer
      %s17 = sadd.s32 1, %s13
    $region7: #{tpu_custom_call.1} parent=1 // loop_footer_branch
      %12 = sbr.rel target = $region3
    $region8: #{tpu_custom_call.1} parent=1 // loop_exit
      _
    %303 = vsyncpa [#allocation3], 1
    %s304 = scalar_lea.sflag [#allocation3], 1
    %305 = vsyncpa %s304, 1
    %306 = vsyncpa [#allocation4], 1
    %s307 = scalar_lea.sflag [#allocation4], 1
    %308 = vsyncpa %s307, 1
    %309 = vsyncpa [#allocation5], 1
    %s310 = scalar_lea.sflag [#allocation5], 1
    %311 = vsyncpa %s310, 1

</llo_original>
